<compile_context>
chip_gen: v7x
topology: tpu7x:2x2x1
jax: 0.10.0
libtpu: 0.0.40
codegen_flags: <defaults>
</compile_context>

<pallas_src>
import jax
import jax.numpy as jnp
from jax.experimental import pallas as pl
from jax.experimental.pallas import tpu as pltpu


def _identity_kernel(x_ref, o_ref):
    # Elementwise identity over the current VMEM tile.
    o_ref[...] = x_ref[...]


_LANE = 128
_MAX_LANES = 4096          # cap lane width (lane-dense, keep >1 row when possible)
_TILE_BYTES = 4 << 20      # ~4 MiB per tile
_VMEM_LIMIT = 32 << 20     # safe scoped-VMEM budget on v5e / v6e / v7x


def _choose_lane_width(total):
    """Largest multiple of 128 (<= _MAX_LANES) that divides `total`, else None."""
    if total % _LANE != 0:
        return None
    for mult in (32, 16, 8, 4, 2, 1):       # 4096, 2048, ..., 128
        cand = _LANE * mult
        if cand <= total and total % cand == 0:
            return cand
    return _LANE


def brainguard_forward(x):
    """Identity forward pass of BrainGuardModule via a Pallas TPU kernel.

    Accepts any-rank input (e.g. NCHW). Returns an array with identical
    shape, dtype, and values.
    """
    orig_shape = x.shape
    orig_dtype = x.dtype
    total = int(x.size)

    if total == 0:
        return x

    flat = x.reshape(-1)

    lanes = _choose_lane_width(total)
    if lanes is None:
        # Pad up to a lane-dense multiple; pad/slice cost is tiny vs. running
        # the copy with masked partial-lane stores.
        lanes = _LANE if total < 1024 else 1024
        padded_total = ((total + lanes - 1) // lanes) * lanes
        flat = jnp.pad(flat, (0, padded_total - total))
        padded = True
    else:
        padded = False

    rows = flat.size // lanes
    x2d = flat.reshape(rows, lanes)

    # Row tile: ~_TILE_BYTES per tile, multiple of 8 rows (or full extent).
    itemsize = jnp.dtype(orig_dtype).itemsize
    bytes_per_row = lanes * itemsize
    tr = max(1, _TILE_BYTES // bytes_per_row)
    if tr >= rows:
        tile_rows = rows                       # single block, full extent (legal)
    else:
        tile_rows = max(8, (tr // 8) * 8)      # multiple of 8
        tile_rows = min(tile_rows, rows)
    grid_rows = pl.cdiv(rows, tile_rows)       # ragged last block handled by Pallas

    out2d = pl.pallas_call(
        _identity_kernel,
        out_shape=jax.ShapeDtypeStruct((rows, lanes), orig_dtype),
        grid=(grid_rows,),
        in_specs=[pl.BlockSpec((tile_rows, lanes), lambda i: (i, 0))],
        out_specs=pl.BlockSpec((tile_rows, lanes), lambda i: (i, 0)),
        input_output_aliases={0: 0},
        compiler_params=pltpu.CompilerParams(
            dimension_semantics=("parallel",),   # lets v7x shard across both TCs
            vmem_limit_bytes=_VMEM_LIMIT,
        ),
    )(x2d)

    out_flat = out2d.reshape(-1)
    if padded:
        out_flat = out_flat[:total]
    return out_flat.reshape(orig_shape)


if __name__ == "__main__":
    key = jax.random.PRNGKey(0)

    # NCHW input, small shape: batch=2, channels=4, spatial=16x16.
    x = jax.random.normal(key, (2, 4, 16, 16), dtype=jnp.float32)
    y = jax.block_until_ready(brainguard_forward(x))
    assert y.shape == x.shape, (y.shape, x.shape)
    assert y.dtype == x.dtype, (y.dtype, x.dtype)
    assert bool(jnp.all(y == x)), "identity kernel output mismatch"

    # Secondary check: element count not a multiple of 128 (exercises pad path).
    x2 = jax.random.normal(jax.random.PRNGKey(1), (3, 5, 7), dtype=jnp.float32)
    y2 = jax.block_until_ready(brainguard_forward(x2))
    assert y2.shape == x2.shape and y2.dtype == x2.dtype
    assert bool(jnp.all(y2 == x2)), "identity kernel output mismatch (pad path)"

    # Larger multi-tile check: forces grid_rows > 1 (ragged last block path).
    x3 = jax.random.normal(jax.random.PRNGKey(2), (8, 4, 256, 256), dtype=jnp.bfloat16)
    y3 = jax.block_until_ready(brainguard_forward(x3))
    assert y3.shape == x3.shape and y3.dtype == x3.dtype
    assert bool(jnp.all(y3 == x3)), "identity kernel output mismatch (multi-tile path)"

    print("KERNEL_OK")
</pallas_src>

<mosaic_0001>
module attributes {stable_mosaic.version = 11 : i64} {
  func.func @_identity_kernel(%arg0: i32, %arg1: memref<1x2048xf32, #tpu.memory_space<vmem>>, %arg2: memref<1x2048xf32, #tpu.memory_space<vmem>>) attributes {dimension_semantics = [#tpu.dimension_semantics<parallel>], iteration_bounds = array<i64: 1>, scalar_prefetch = 0 : i64, scratch_operands = 0 : i64, tpu.core_type = #tpu.core_type<tc>, window_params = [{transform_indices = @transform_0, window_bounds = array<i64: 1, 2048>}, {transform_indices = @transform_1, window_bounds = array<i64: 1, 2048>}]} {
    %c0 = arith.constant 0 : index
    %c0_0 = arith.constant 0 : index
    %0 = vector.load %arg1[%c0, %c0_0] : memref<1x2048xf32, #tpu.memory_space<vmem>>, vector<1x2048xf32>
    %c0_1 = arith.constant 0 : index
    %c0_2 = arith.constant 0 : index
    %1 = vector.load %arg2[%c0_1, %c0_2] : memref<1x2048xf32, #tpu.memory_space<vmem>>, vector<1x2048xf32>
    tpu.vector_store %arg2[%c0_1, %c0_2], %0 {strides = array<i32>} : memref<1x2048xf32, #tpu.memory_space<vmem>>, vector<1x2048xf32>,
    return
  }
  func.func @transform_0(%arg0: i32) -> (i32, i32) {
    %c0_i32 = arith.constant 0 : i32
    %c0_i32_0 = arith.constant 0 : i32
    return %arg0, %c0_i32 : i32, i32
  }
  func.func @transform_1(%arg0: i32) -> (i32, i32) {
    %c0_i32 = arith.constant 0 : i32
    %c0_i32_0 = arith.constant 0 : i32
    return %arg0, %c0_i32 : i32, i32
  }
}

</mosaic_0001>

<llo_original>
// kernel: tpu_custom_call.1
$region0: #{tpu_custom_call.1}
  #allocation0 [shape = 'u32[]', space=smem, size = 0x4, offset = 0x4, fixed_abs, tag = 'smem constant byte address 0x4 - core index']
  #allocation1 [shape = 'u32[144,128]{1,0:T(1,128)}', space=vmem, size = 0x12000, scoped, tag = 'internal scratch']
  %s0 = inlined_call_operand.hbm [shape: f32[1,2048], index: 0, kind: input, shape index: {}, may-alias: {0,1}]
  %s1 = inlined_call_operand.hbm [shape: f32[1,2048], index: 1, kind: output, shape index: {}, may-alias: {0,1}]
  %s2 = sld [smem:[#allocation0]]
  $region18: #{tpu_custom_call.1} parent=0
    _
  %s4 = ssub.s32 1, %s2
  %s5 = scalar_select 0, %s4, %s2
  $region1: #{tpu_custom_call.1} parent=0
    #allocation2 [shape = 'u8[8192]{0}', space=vmem, size = 0x2000, scoped, tag = 'input window, operand 0, single buffered']
    #allocation3 [shape = 's32[1]{0}', space=sflag, size = 0x4, scoped, tag = 'scoped memory for tpu_custom_call.1']
    #allocation4 [shape = 's32[1]{0}', space=sflag, size = 0x4, scoped, tag = 'scoped memory for tpu_custom_call.1']
    #allocation5 [shape = 'u8[8192]{0}', space=vmem, size = 0x2000, scoped, tag = 'output window, operand 0, single buffered']
    %6 = vsyncpa [#allocation3], 0
    %7 = vsyncpa [#allocation4], 0
    // Predicated region
    $region2: #{tpu_custom_call.1} parent=1 // pred_check
      _
    $region3: #{tpu_custom_call.1} parent=1 // pred_check_branch
      %9 = sbr.rel (0) target = $region5
    $region4: #{tpu_custom_call.1} parent=1 // pred_region
      %s11 = ssub.s32 256, 256
      %12 = vsyncadd [#allocation3], %s11
      %s14 = sshll.u32 [#allocation2], 4
      %s15 = int_to_ptr.vmem [resolvable:$true] %s14
      %17 = dma.hbm_to_vmem [thread:$0]  %s0, 256, %s15, [#allocation3]
    $region5: #{tpu_custom_call.1} parent=1 // pred_fallthru
      _
    // Predicated region
    $region6: #{tpu_custom_call.1} parent=1 // pred_check
      _
    $region7: #{tpu_custom_call.1} parent=1 // pred_check_branch
      %19 = sbr.rel (0) target = $region9
    $region8: #{tpu_custom_call.1} parent=1 // pred_region
      %20 = dma.done [#allocation3], 256
    $region9: #{tpu_custom_call.1} parent=1 // pred_fallthru
      _
    %v21 = vld [vmem:[#allocation2] sm:$0xff]
    %v22 = vld [vmem:[#allocation2 + $0x8] sm:$0xff]
    %23 = vst [vmem:[#allocation5] sm:$0xff] %v21
    %24 = vst [vmem:[#allocation5 + $0x8] sm:$0xff] %v22
    // Predicated region
    $region10: #{tpu_custom_call.1} parent=1 // pred_check
      _
    $region11: #{tpu_custom_call.1} parent=1 // pred_check_branch
      %26 = sbr.rel (0) target = $region13
    $region12: #{tpu_custom_call.1} parent=1 // pred_region
      %s28 = ssub.s32 256, 256
      %29 = vsyncadd [#allocation4], %s28
      %s31 = sshll.u32 [#allocation5], 4
      %s32 = int_to_ptr.vmem [resolvable:$true] %s31
      %34 = dma.vmem_to_hbm [thread:$0]  %s32, 256, %s1, [#allocation4]
    $region13: #{tpu_custom_call.1} parent=1 // pred_fallthru
      _
    // Predicated region
    $region14: #{tpu_custom_call.1} parent=1 // pred_check
      _
    $region15: #{tpu_custom_call.1} parent=1 // pred_check_branch
      %36 = sbr.rel (0) target = $region17
    $region16: #{tpu_custom_call.1} parent=1 // pred_region
      %37 = dma.done [#allocation4], 256
    $region17: #{tpu_custom_call.1} parent=1 // pred_fallthru
      _
    %38 = vsyncpa [#allocation3], 1
    %39 = vsyncpa [#allocation4], 1

</llo_original>
